<compile_context>
chip_gen: v6e
topology: v6e:2x2x1
jax: 0.10.0
libtpu: 0.0.40
codegen_flags: <defaults>
</compile_context>

<pallas_src>
import functools

import jax
import jax.numpy as jnp
from jax import lax
from jax.experimental import pallas as pl
from jax.experimental.pallas import tpu as pltpu

NMS_SIZE = 5                    # MaxPool2d kernel_size from __init__
THR = 0.0                       # threshold from __init__
GAP = NMS_SIZE // 2             # pooling halo (= MaxPool2d padding)

_LANE = 128
_SUBLANE = 8
_TARGET_BLOCK_BYTES = 2 << 20   # ~2 MiB of framed scores per pipelined block


def _cdiv(a, b):
    return -(-a // b)


def _round_up(n, m):
    return _cdiv(n, m) * m


def _plan(shape, target_block_bytes=_TARGET_BLOCK_BYTES):
    """Static (python-int) tiling plan derived from the input shape."""
    B, C, H, W = shape
    Wl = _round_up(W + GAP, _LANE)                  # >= GAP trailing -inf lanes
    row_budget = max(6 * _SUBLANE, target_block_bytes // (4 * Wl))
    tiles_per_plane = max(1, _cdiv(H, max(_SUBLANE, row_budget - 2 * GAP)))
    TI = _cdiv(H, tiles_per_plane)                  # interior rows per tile
    TR = _round_up(TI + 2 * GAP, _SUBLANE)          # framed rows per segment
    S = B * C * tiles_per_plane                     # total segments
    seg_per_block = max(1, min(S, row_budget // TR))
    num_blocks = _cdiv(S, seg_per_block)
    # -inf guards must be at least GAP wide for the roll wraparound to be safe.
    assert Wl - W >= GAP and TR - TI >= 2 * GAP
    return dict(B=B, C=C, H=H, W=W, Wl=Wl, TI=TI, TR=TR,
                tiles_per_plane=tiles_per_plane, S=S,
                seg_per_block=seg_per_block, num_blocks=num_blocks,
                block_rows=seg_per_block * TR,
                rows=num_blocks * seg_per_block * TR)


def _nms_kernel(s_ref, gate_ref, m_ref, *, thr):
    """One (block_rows, Wl) framed block -> int8 maxima mask.

    s_ref holds whole framed segments, so every tap of the separable 5-tap max
    that leaves a plane reads -inf, and the rolls' wraparound only pollutes
    rows whose output the gate discards.  gate_ref is (block_rows, 128) with
    0.0 on interior rows and -inf on halo/pad rows (halo rows duplicate
    neighbour-tile data and must not emit detections).
    """
    s = s_ref[...]
    R, Wl = s.shape

    # Lane (W) axis: 5-tap running max with 3 rolls + 3 maxes.
    c2 = jnp.maximum(s, pltpu.roll(s, shift=1, axis=1))
    h = jnp.maximum(jnp.maximum(c2, pltpu.roll(c2, shift=Wl - 2, axis=1)),
                    pltpu.roll(s, shift=2, axis=1))

    # Sublane (row) axis: same pattern on the horizontal running max.
    v2 = jnp.maximum(h, pltpu.roll(h, shift=1, axis=0))
    mx = jnp.maximum(jnp.maximum(v2, pltpu.roll(v2, shift=R - 2, axis=0)),
                     pltpu.roll(h, shift=2, axis=0))

    gate = gate_ref[...][:, :1]                     # (R, 1): 0.0 keep, -inf drop
    maxima = jnp.logical_and(s == mx, (s + gate) > thr)
    m_ref[...] = maxima.astype(jnp.int8)


@functools.partial(jax.jit, static_argnames=("thr", "target_block_bytes"))
def nms_framed_mask(scores, thr=THR, target_block_bytes=_TARGET_BLOCK_BYTES):
    """int8 maxima mask in framed (rows, Wl) layout (see _plan)."""
    B, C, H, W = scores.shape
    p = _plan(scores.shape, target_block_bytes)
    dtype = scores.dtype
    neg = jnp.asarray(-jnp.inf, dtype)

    # --- framing glue: one lane pad + one row gather, no transpose ----------
    x2d = scores.reshape(B * C * H, W)
    x2d = jnp.pad(x2d, ((0, 0), (0, p["Wl"] - W)), constant_values=-jnp.inf)

    seg = jnp.arange(p["num_blocks"] * p["seg_per_block"], dtype=jnp.int32)
    plane = seg // p["tiles_per_plane"]
    tile = seg % p["tiles_per_plane"]
    r = jnp.arange(p["TR"], dtype=jnp.int32)
    y = tile[:, None] * p["TI"] + (r[None, :] - GAP)            # (S_pad, TR)
    valid = ((y >= 0) & (y < H) & (r[None, :] < p["TI"] + 2 * GAP)
             & (plane[:, None] < B * C))
    src = plane[:, None] * H + jnp.clip(y, 0, H - 1)
    src = jnp.clip(src, 0, B * C * H - 1).reshape(-1)
    framed = jnp.take(x2d, src, axis=0)                         # (rows, Wl)
    framed = jnp.where(valid.reshape(-1)[:, None], framed, neg)

    # Per-row gate, TR-periodic over a block (identical for every block).
    rin = jnp.arange(p["block_rows"], dtype=jnp.int32) % p["TR"]
    keep = (rin >= GAP) & (rin < GAP + p["TI"])
    gate = jnp.where(keep, 0.0, -jnp.inf).astype(dtype)[:, None]
    gate = jnp.broadcast_to(gate, (p["block_rows"], _LANE))

    # --- Pallas call ---------------------------------------------------------
    in_blk = p["block_rows"] * p["Wl"] * dtype.itemsize
    out_blk = p["block_rows"] * p["Wl"]
    gate_blk = p["block_rows"] * _LANE * dtype.itemsize
    needed = 8 * in_blk + 2 * out_blk + 2 * gate_blk            # generous
    vmem_limit = int(min(48 << 20, max(32 << 20, needed)))

    return pl.pallas_call(
        functools.partial(_nms_kernel, thr=float(thr)),
        out_shape=jax.ShapeDtypeStruct((p["rows"], p["Wl"]), jnp.int8),
        grid=(p["num_blocks"],),
        in_specs=[
            pl.BlockSpec((p["block_rows"], p["Wl"]), lambda i: (i, 0)),
            pl.BlockSpec((p["block_rows"], _LANE), lambda i: (0, 0)),
        ],
        out_specs=pl.BlockSpec((p["block_rows"], p["Wl"]), lambda i: (i, 0)),
        compiler_params=pltpu.CompilerParams(
            dimension_semantics=("parallel",),
            vmem_limit_bytes=vmem_limit),
    )(framed, gate)


def nms_dense_mask(scores, thr=THR, target_block_bytes=_TARGET_BLOCK_BYTES):
    """(B, C, H, W) bool mask -- verification helper, not the fast path."""
    B, C, H, W = scores.shape
    p = _plan(scores.shape, target_block_bytes)
    m = nms_framed_mask(scores, thr=thr, target_block_bytes=target_block_bytes)
    m = m[:p["S"] * p["TR"]].reshape(p["S"], p["TR"], p["Wl"])
    m = m[:, GAP:GAP + p["TI"], :W]
    m = m.reshape(B, C, p["tiles_per_plane"] * p["TI"], W)[:, :, :H, :]
    return m != 0


def non_max_suppression(scores, thr=THR, target_block_bytes=_TARGET_BLOCK_BYTES):
    """Full forward: Pallas mask + data-dependent nonzero() as glue."""
    p = _plan(scores.shape, target_block_bytes)
    mask = nms_framed_mask(scores, thr=thr, target_block_bytes=target_block_bytes)
    # TODO(synk): nonzero() has a data-dependent output shape -> no static-shape
    # Pallas equivalent; done on the framed int8 mask (no unframing HBM pass).
    # PyTorch returns int64 indices; JAX defaults to int32 with x64 disabled.
    rows, lanes = jnp.nonzero(mask)
    rin = rows % p["TR"]
    tile = (rows // p["TR"]) % p["tiles_per_plane"]
    y = tile * p["TI"] + (rin - GAP)
    return jnp.stack([y, lanes]).astype(jnp.int32)              # (2, N) = (y, x)


def _reference_mask(scores, thr=THR):
    """Pure-JAX reference for the hot path (sanity check)."""
    pad = NMS_SIZE // 2
    pooled = lax.reduce_window(
        scores, -jnp.inf, lax.max,
        window_dimensions=(1, 1, NMS_SIZE, NMS_SIZE),
        window_strides=(1, 1, 1, 1),
        padding=[(0, 0), (0, 0), (pad, pad), (pad, pad)])
    return jnp.logical_and(scores == pooled, scores > thr)


if __name__ == "__main__":
    key = jax.random.PRNGKey(0)

    # Primary (small) test: all planes fold into a single grid step.
    B, C, H, W = 2, 4, 16, 16
    scores = jax.random.normal(key, (B, C, H, W), dtype=jnp.float32)
    mask = jax.block_until_ready(nms_dense_mask(scores))
    ref = _reference_mask(scores)
    assert bool(jnp.array_equal(mask, ref)), "Pallas NMS mask mismatch vs reference"

    out = jax.block_until_ready(non_max_suppression(scores))
    ref_idx = jnp.stack(jnp.nonzero(ref))[2:4].astype(out.dtype)
    assert out.shape == ref_idx.shape, "index count mismatch"
    assert bool(jnp.array_equal(out, ref_idx)), "Pallas NMS indices mismatch"

    # Secondary test: force within-plane row tiling (duplicated halo rows, the
    # per-row gate, and a multi-block parallel grid) with a small block budget.
    s2 = jax.random.normal(jax.random.PRNGKey(0), (1, 1, 200, 160),
                           dtype=jnp.float32)
    small = 64 << 10
    m2 = jax.block_until_ready(nms_dense_mask(s2, target_block_bytes=small))
    r2 = _reference_mask(s2)
    assert bool(jnp.array_equal(m2, r2)), "tiled NMS mask mismatch vs reference"
    o2 = jax.block_until_ready(non_max_suppression(s2, target_block_bytes=small))
    r2_idx = jnp.stack(jnp.nonzero(r2))[2:4].astype(o2.dtype)
    assert bool(jnp.array_equal(o2, r2_idx)), "tiled NMS indices mismatch"

    print("KERNEL_OK")
</pallas_src>

<mosaic_0001>
module attributes {stable_mosaic.version = 11 : i64} {
  func.func @_nms_kernel(%arg0: i32, %arg1: memref<192x128xf32, #tpu.memory_space<vmem>>, %arg2: memref<192x128xf32, #tpu.memory_space<vmem>>, %arg3: memref<192x128xi8, #tpu.memory_space<vmem>>) attributes {dimension_semantics = [#tpu.dimension_semantics<parallel>], iteration_bounds = array<i64: 1>, scalar_prefetch = 0 : i64, scratch_operands = 0 : i64, tpu.core_type = #tpu.core_type<tc>, window_params = [{transform_indices = @transform_0, window_bounds = array<i64: 192, 128>}, {pipeline_mode = #tpu.pipeline_mode<synchronous>, transform_indices = @transform_1, window_bounds = array<i64: 192, 128>}, {transform_indices = @transform_2, window_bounds = array<i64: 192, 128>}]} {
    %c0 = arith.constant 0 : index
    %c0_0 = arith.constant 0 : index
    %0 = vector.load %arg1[%c0, %c0_0] : memref<192x128xf32, #tpu.memory_space<vmem>>, vector<192x128xf32>
    %c1_i32 = arith.constant 1 : i32
    %1 = tpu.dynamic_rotate %0 by %c1_i32 dim 1 : vector<192x128xf32>, i32 -> vector<192x128xf32>
    %2 = arith.maximumf %0, %1 : vector<192x128xf32>
    %c126_i32 = arith.constant 126 : i32
    %3 = tpu.dynamic_rotate %2 by %c126_i32 dim 1 : vector<192x128xf32>, i32 -> vector<192x128xf32>
    %4 = arith.maximumf %2, %3 : vector<192x128xf32>
    %c2_i32 = arith.constant 2 : i32
    %5 = tpu.dynamic_rotate %0 by %c2_i32 dim 1 : vector<192x128xf32>, i32 -> vector<192x128xf32>
    %6 = arith.maximumf %4, %5 : vector<192x128xf32>
    %c1_i32_1 = arith.constant 1 : i32
    %7 = tpu.dynamic_rotate %6 by %c1_i32_1 dim 0 : vector<192x128xf32>, i32 -> vector<192x128xf32>
    %8 = arith.maximumf %6, %7 : vector<192x128xf32>
    %c190_i32 = arith.constant 190 : i32
    %9 = tpu.dynamic_rotate %8 by %c190_i32 dim 0 : vector<192x128xf32>, i32 -> vector<192x128xf32>
    %10 = arith.maximumf %8, %9 : vector<192x128xf32>
    %c2_i32_2 = arith.constant 2 : i32
    %11 = tpu.dynamic_rotate %6 by %c2_i32_2 dim 0 : vector<192x128xf32>, i32 -> vector<192x128xf32>
    %12 = arith.maximumf %10, %11 : vector<192x128xf32>
    %c0_3 = arith.constant 0 : index
    %c0_4 = arith.constant 0 : index
    %13 = vector.load %arg2[%c0_3, %c0_4] : memref<192x128xf32, #tpu.memory_space<vmem>>, vector<192x128xf32>
    %14 = vector.extract_strided_slice %13 {offsets = [0, 0], sizes = [192, 1], strides = [1, 1]} : vector<192x128xf32> to vector<192x1xf32>
    %15 = arith.cmpf oeq, %0, %12 : vector<192x128xf32>
    %16 = vector.broadcast %14 : vector<192x1xf32> to vector<192x128xf32>
    %17 = arith.addf %0, %16 : vector<192x128xf32>
    %cst = arith.constant 0.000000e+00 : f32
    %18 = vector.broadcast %cst : f32 to vector<192x128xf32>
    %19 = arith.cmpf ogt, %17, %18 : vector<192x128xf32>
    %20 = arith.andi %15, %19 : vector<192x128xi1>
    %21 = arith.extui %20 : vector<192x128xi1> to vector<192x128xi8>
    %c0_5 = arith.constant 0 : index
    %c0_6 = arith.constant 0 : index
    %22 = vector.load %arg3[%c0_5, %c0_6] : memref<192x128xi8, #tpu.memory_space<vmem>>, vector<192x128xi8>
    tpu.vector_store %arg3[%c0_5, %c0_6], %21 {strides = array<i32>} : memref<192x128xi8, #tpu.memory_space<vmem>>, vector<192x128xi8>,
    return
  }
  func.func @transform_0(%arg0: i32) -> (i32, i32) {
    %c0_i32 = arith.constant 0 : i32
    %c0_i32_0 = arith.constant 0 : i32
    return %arg0, %c0_i32 : i32, i32
  }
  func.func @transform_1(%arg0: i32) -> (i32, i32) {
    %c0_i32 = arith.constant 0 : i32
    %c0_i32_0 = arith.constant 0 : i32
    %c0_i32_1 = arith.constant 0 : i32
    return %c0_i32, %c0_i32_0 : i32, i32
  }
  func.func @transform_2(%arg0: i32) -> (i32, i32) {
    %c0_i32 = arith.constant 0 : i32
    %c0_i32_0 = arith.constant 0 : i32
    return %arg0, %c0_i32 : i32, i32
  }
}

</mosaic_0001>

<llo_original>
// kernel: nms_framed_mask.1
$region0: #{nms_framed_mask.1}
  #allocation0 [shape = 'u32[]', space=smem, size = 0x4, offset = 0x4, fixed_abs, tag = 'smem constant byte address 0x4 - core index']
  #allocation1 [shape = 'u32[144,128]{1,0:T(1,128)}', space=vmem, size = 0x12000, scoped, tag = 'internal scratch']
  %s0 = inlined_call_operand.vmem [shape: f32[192,128], index: 0, kind: input, shape index: {}]
  %s1 = inlined_call_operand.vmem [shape: f32[192,128], index: 1, kind: input, shape index: {}]
  %s2 = inlined_call_operand.hbm [shape: s8[192,128], index: 2, kind: output, shape index: {}]
  %s3 = sld [smem:[#allocation0]]
  $region18: #{nms_framed_mask.1} parent=0
    _
  %s5 = ssub.s32 1, %s3
  %s6 = scalar_select 0, %s5, %s3
  $region1: #{nms_framed_mask.1} parent=0
    #allocation2 [shape = 'u8[24576]{0}', space=vmem, size = 0x6000, scoped, tag = 'output window, operand 0, single buffered']
    #allocation3 [shape = 's32[1]{0}', space=sflag, size = 0x4, scoped, tag = 'scoped memory for nms_framed_mask.1']
    %7 = vsyncpa [#allocation3], 0
    // Predicated region
    $region2: #{nms_framed_mask.1} parent=1 // pred_check
      _
    $region3: #{nms_framed_mask.1} parent=1 // pred_check_branch
      %9 = sbr.rel (0) target = $region5
    $region4: #{nms_framed_mask.1} parent=1 // pred_region
      _
    $region5: #{nms_framed_mask.1} parent=1 // pred_fallthru
      _
    // Predicated region
    $region6: #{nms_framed_mask.1} parent=1 // pred_check
      _
    $region7: #{nms_framed_mask.1} parent=1 // pred_check_branch
      %11 = sbr.rel (0) target = $region9
    $region8: #{nms_framed_mask.1} parent=1 // pred_region
      _
    $region9: #{nms_framed_mask.1} parent=1 // pred_fallthru
      _
    %v14 = vld [vmem:[%s0] sm:$0xff]
    %v15 = vld [vmem:[%s0 + $0x8] sm:$0xff]
    %v16 = vld [vmem:[%s0 + $0x10] sm:$0xff]
    %v17 = vld [vmem:[%s0 + $0x18] sm:$0xff]
    %v18 = vld [vmem:[%s0 + $0x20] sm:$0xff]
    %v19 = vld [vmem:[%s0 + $0x28] sm:$0xff]
    %v20 = vld [vmem:[%s0 + $0x30] sm:$0xff]
    %v21 = vld [vmem:[%s0 + $0x38] sm:$0xff]
    %v22 = vld [vmem:[%s0 + $0x40] sm:$0xff]
    %v23 = vld [vmem:[%s0 + $0x48] sm:$0xff]
    %v24 = vld [vmem:[%s0 + $0x50] sm:$0xff]
    %v25 = vld [vmem:[%s0 + $0x58] sm:$0xff]
    %v26 = vld [vmem:[%s0 + $0x60] sm:$0xff]
    %v27 = vld [vmem:[%s0 + $0x68] sm:$0xff]
    %v28 = vld [vmem:[%s0 + $0x70] sm:$0xff]
    %v29 = vld [vmem:[%s0 + $0x78] sm:$0xff]
    %v30 = vld [vmem:[%s0 + $0x80] sm:$0xff]
    %v31 = vld [vmem:[%s0 + $0x88] sm:$0xff]
    %v32 = vld [vmem:[%s0 + $0x90] sm:$0xff]
    %v33 = vld [vmem:[%s0 + $0x98] sm:$0xff]
    %v34 = vld [vmem:[%s0 + $0xa0] sm:$0xff]
    %v35 = vld [vmem:[%s0 + $0xa8] sm:$0xff]
    %v36 = vld [vmem:[%s0 + $0xb0] sm:$0xff]
    %v37 = vld [vmem:[%s0 + $0xb8] sm:$0xff]
    %38 = vrot.lane.b32.xlu0 %v14, 1
    %v39 = vpop.permute.xlu0 %38
    %40 = vrot.lane.b32.xlu0 %v15, 1
    %v41 = vpop.permute.xlu0 %40
    %42 = vrot.lane.b32.xlu0 %v16, 1
    %v43 = vpop.permute.xlu0 %42
    %44 = vrot.lane.b32.xlu0 %v17, 1
    %v45 = vpop.permute.xlu0 %44
    %46 = vrot.lane.b32.xlu0 %v18, 1
    %v47 = vpop.permute.xlu0 %46
    %48 = vrot.lane.b32.xlu0 %v19, 1
    %v49 = vpop.permute.xlu0 %48
    %50 = vrot.lane.b32.xlu0 %v20, 1
    %v51 = vpop.permute.xlu0 %50
    %52 = vrot.lane.b32.xlu0 %v21, 1
    %v53 = vpop.permute.xlu0 %52
    %54 = vrot.lane.b32.xlu0 %v22, 1
    %v55 = vpop.permute.xlu0 %54
    %56 = vrot.lane.b32.xlu0 %v23, 1
    %v57 = vpop.permute.xlu0 %56
    %58 = vrot.lane.b32.xlu0 %v24, 1
    %v59 = vpop.permute.xlu0 %58
    %60 = vrot.lane.b32.xlu0 %v25, 1
    %v61 = vpop.permute.xlu0 %60
    %62 = vrot.lane.b32.xlu0 %v26, 1
    %v63 = vpop.permute.xlu0 %62
    %64 = vrot.lane.b32.xlu0 %v27, 1
    %v65 = vpop.permute.xlu0 %64
    %66 = vrot.lane.b32.xlu0 %v28, 1
    %v67 = vpop.permute.xlu0 %66
    %68 = vrot.lane.b32.xlu0 %v29, 1
    %v69 = vpop.permute.xlu0 %68
    %70 = vrot.lane.b32.xlu0 %v30, 1
    %v71 = vpop.permute.xlu0 %70
    %72 = vrot.lane.b32.xlu0 %v31, 1
    %v73 = vpop.permute.xlu0 %72
    %74 = vrot.lane.b32.xlu0 %v32, 1
    %v75 = vpop.permute.xlu0 %74
    %76 = vrot.lane.b32.xlu0 %v33, 1
    %v77 = vpop.permute.xlu0 %76
    %78 = vrot.lane.b32.xlu0 %v34, 1
    %v79 = vpop.permute.xlu0 %78
    %80 = vrot.lane.b32.xlu0 %v35, 1
    %v81 = vpop.permute.xlu0 %80
    %82 = vrot.lane.b32.xlu0 %v36, 1
    %v83 = vpop.permute.xlu0 %82
    %84 = vrot.lane.b32.xlu0 %v37, 1
    %v85 = vpop.permute.xlu0 %84
    %v86 = vmax.f32 %v14, %v39
    %v87 = vmax.f32 %v15, %v41
    %v88 = vmax.f32 %v16, %v43
    %v89 = vmax.f32 %v17, %v45
    %v90 = vmax.f32 %v18, %v47
    %v91 = vmax.f32 %v19, %v49
    %v92 = vmax.f32 %v20, %v51
    %v93 = vmax.f32 %v21, %v53
    %v94 = vmax.f32 %v22, %v55
    %v95 = vmax.f32 %v23, %v57
    %v96 = vmax.f32 %v24, %v59
    %v97 = vmax.f32 %v25, %v61
    %v98 = vmax.f32 %v26, %v63
    %v99 = vmax.f32 %v27, %v65
    %v100 = vmax.f32 %v28, %v67
    %v101 = vmax.f32 %v29, %v69
    %v102 = vmax.f32 %v30, %v71
    %v103 = vmax.f32 %v31, %v73
    %v104 = vmax.f32 %v32, %v75
    %v105 = vmax.f32 %v33, %v77
    %v106 = vmax.f32 %v34, %v79
    %v107 = vmax.f32 %v35, %v81
    %v108 = vmax.f32 %v36, %v83
    %v109 = vmax.f32 %v37, %v85
    %110 = vrot.lane.b32.xlu0 %v86, 126
    %v111 = vpop.permute.xlu0 %110
    %112 = vrot.lane.b32.xlu0 %v87, 126
    %v113 = vpop.permute.xlu0 %112
    %114 = vrot.lane.b32.xlu0 %v88, 126
    %v115 = vpop.permute.xlu0 %114
    %116 = vrot.lane.b32.xlu0 %v89, 126
    %v117 = vpop.permute.xlu0 %116
    %118 = vrot.lane.b32.xlu0 %v90, 126
    %v119 = vpop.permute.xlu0 %118
    %120 = vrot.lane.b32.xlu0 %v91, 126
    %v121 = vpop.permute.xlu0 %120
    %122 = vrot.lane.b32.xlu0 %v92, 126
    %v123 = vpop.permute.xlu0 %122
    %124 = vrot.lane.b32.xlu0 %v93, 126
    %v125 = vpop.permute.xlu0 %124
    %126 = vrot.lane.b32.xlu0 %v94, 126
    %v127 = vpop.permute.xlu0 %126
    %128 = vrot.lane.b32.xlu0 %v95, 126
    %v129 = vpop.permute.xlu0 %128
    %130 = vrot.lane.b32.xlu0 %v96, 126
    %v131 = vpop.permute.xlu0 %130
    %132 = vrot.lane.b32.xlu0 %v97, 126
    %v133 = vpop.permute.xlu0 %132
    %134 = vrot.lane.b32.xlu0 %v98, 126
    %v135 = vpop.permute.xlu0 %134
    %136 = vrot.lane.b32.xlu0 %v99, 126
    %v137 = vpop.permute.xlu0 %136
    %138 = vrot.lane.b32.xlu0 %v100, 126
    %v139 = vpop.permute.xlu0 %138
    %140 = vrot.lane.b32.xlu0 %v101, 126
    %v141 = vpop.permute.xlu0 %140
    %142 = vrot.lane.b32.xlu0 %v102, 126
    %v143 = vpop.permute.xlu0 %142
    %144 = vrot.lane.b32.xlu0 %v103, 126
    %v145 = vpop.permute.xlu0 %144
    %146 = vrot.lane.b32.xlu0 %v104, 126
    %v147 = vpop.permute.xlu0 %146
    %148 = vrot.lane.b32.xlu0 %v105, 126
    %v149 = vpop.permute.xlu0 %148
    %150 = vrot.lane.b32.xlu0 %v106, 126
    %v151 = vpop.permute.xlu0 %150
    %152 = vrot.lane.b32.xlu0 %v107, 126
    %v153 = vpop.permute.xlu0 %152
    %154 = vrot.lane.b32.xlu0 %v108, 126
    %v155 = vpop.permute.xlu0 %154
    %156 = vrot.lane.b32.xlu0 %v109, 126
    %v157 = vpop.permute.xlu0 %156
    %v158 = vmax.f32 %v86, %v111
    %v159 = vmax.f32 %v87, %v113
    %v160 = vmax.f32 %v88, %v115
    %v161 = vmax.f32 %v89, %v117
    %v162 = vmax.f32 %v90, %v119
    %v163 = vmax.f32 %v91, %v121
    %v164 = vmax.f32 %v92, %v123
    %v165 = vmax.f32 %v93, %v125
    %v166 = vmax.f32 %v94, %v127
    %v167 = vmax.f32 %v95, %v129
    %v168 = vmax.f32 %v96, %v131
    %v169 = vmax.f32 %v97, %v133
    %v170 = vmax.f32 %v98, %v135
    %v171 = vmax.f32 %v99, %v137
    %v172 = vmax.f32 %v100, %v139
    %v173 = vmax.f32 %v101, %v141
    %v174 = vmax.f32 %v102, %v143
    %v175 = vmax.f32 %v103, %v145
    %v176 = vmax.f32 %v104, %v147
    %v177 = vmax.f32 %v105, %v149
    %v178 = vmax.f32 %v106, %v151
    %v179 = vmax.f32 %v107, %v153
    %v180 = vmax.f32 %v108, %v155
    %v181 = vmax.f32 %v109, %v157
    %182 = vrot.lane.b32.xlu0 %v14, 2
    %v183 = vpop.permute.xlu0 %182
    %184 = vrot.lane.b32.xlu0 %v15, 2
    %v185 = vpop.permute.xlu0 %184
    %186 = vrot.lane.b32.xlu0 %v16, 2
    %v187 = vpop.permute.xlu0 %186
    %188 = vrot.lane.b32.xlu0 %v17, 2
    %v189 = vpop.permute.xlu0 %188
    %190 = vrot.lane.b32.xlu0 %v18, 2
    %v191 = vpop.permute.xlu0 %190
    %192 = vrot.lane.b32.xlu0 %v19, 2
    %v193 = vpop.permute.xlu0 %192
    %194 = vrot.lane.b32.xlu0 %v20, 2
    %v195 = vpop.permute.xlu0 %194
    %196 = vrot.lane.b32.xlu0 %v21, 2
    %v197 = vpop.permute.xlu0 %196
    %198 = vrot.lane.b32.xlu0 %v22, 2
    %v199 = vpop.permute.xlu0 %198
    %200 = vrot.lane.b32.xlu0 %v23, 2
    %v201 = vpop.permute.xlu0 %200
    %202 = vrot.lane.b32.xlu0 %v24, 2
    %v203 = vpop.permute.xlu0 %202
    %204 = vrot.lane.b32.xlu0 %v25, 2
    %v205 = vpop.permute.xlu0 %204
    %206 = vrot.lane.b32.xlu0 %v26, 2
    %v207 = vpop.permute.xlu0 %206
    %208 = vrot.lane.b32.xlu0 %v27, 2
    %v209 = vpop.permute.xlu0 %208
    %210 = vrot.lane.b32.xlu0 %v28, 2
    %v211 = vpop.permute.xlu0 %210
    %212 = vrot.lane.b32.xlu0 %v29, 2
    %v213 = vpop.permute.xlu0 %212
    %214 = vrot.lane.b32.xlu0 %v30, 2
    %v215 = vpop.permute.xlu0 %214
    %216 = vrot.lane.b32.xlu0 %v31, 2
    %v217 = vpop.permute.xlu0 %216
    %218 = vrot.lane.b32.xlu0 %v32, 2
    %v219 = vpop.permute.xlu0 %218
    %220 = vrot.lane.b32.xlu0 %v33, 2
    %v221 = vpop.permute.xlu0 %220
    %222 = vrot.lane.b32.xlu0 %v34, 2
    %v223 = vpop.permute.xlu0 %222
    %224 = vrot.lane.b32.xlu0 %v35, 2
    %v225 = vpop.permute.xlu0 %224
    %226 = vrot.lane.b32.xlu0 %v36, 2
    %v227 = vpop.permute.xlu0 %226
    %228 = vrot.lane.b32.xlu0 %v37, 2
    %v229 = vpop.permute.xlu0 %228
    %v230 = vmax.f32 %v158, %v183
    %v231 = vmax.f32 %v159, %v185
    %v232 = vmax.f32 %v160, %v187
    %v233 = vmax.f32 %v161, %v189
    %v234 = vmax.f32 %v162, %v191
    %v235 = vmax.f32 %v163, %v193
    %v236 = vmax.f32 %v164, %v195
    %v237 = vmax.f32 %v165, %v197
    %v238 = vmax.f32 %v166, %v199
    %v239 = vmax.f32 %v167, %v201
    %v240 = vmax.f32 %v168, %v203
    %v241 = vmax.f32 %v169, %v205
    %v242 = vmax.f32 %v170, %v207
    %v243 = vmax.f32 %v171, %v209
    %v244 = vmax.f32 %v172, %v211
    %v245 = vmax.f32 %v173, %v213
    %v246 = vmax.f32 %v174, %v215
    %v247 = vmax.f32 %v175, %v217
    %v248 = vmax.f32 %v176, %v219
    %v249 = vmax.f32 %v177, %v221
    %v250 = vmax.f32 %v178, %v223
    %v251 = vmax.f32 %v179, %v225
    %v252 = vmax.f32 %v180, %v227
    %v253 = vmax.f32 %v181, %v229
    %v254 = vrot.slane %v230, 7
    %v255 = vrot.slane %v231, 7
    %v256 = vrot.slane %v232, 7
    %v257 = vrot.slane %v233, 7
    %v258 = vrot.slane %v234, 7
    %v259 = vrot.slane %v235, 7
    %v260 = vrot.slane %v236, 7
    %v261 = vrot.slane %v237, 7
    %v262 = vrot.slane %v238, 7
    %v263 = vrot.slane %v239, 7
    %v264 = vrot.slane %v240, 7
    %v265 = vrot.slane %v241, 7
    %v266 = vrot.slane %v242, 7
    %v267 = vrot.slane %v243, 7
    %v268 = vrot.slane %v244, 7
    %v269 = vrot.slane %v245, 7
    %v270 = vrot.slane %v246, 7
    %v271 = vrot.slane %v247, 7
    %v272 = vrot.slane %v248, 7
    %v273 = vrot.slane %v249, 7
    %v274 = vrot.slane %v250, 7
    %v275 = vrot.slane %v251, 7
    %v276 = vrot.slane %v252, 7
    %v277 = vrot.slane %v253, 7
    %v278 = vlaneseq
    %v279 = vshrl.u32 %v278, 7
    %vm280 = vcmp.lt.s32.totalorder %v279, 1
    %v281 = vsel %vm280, %v276, %v277
    %v282 = vsel %vm280, %v275, %v276
    %v283 = vsel %vm280, %v274, %v275
    %v284 = vsel %vm280, %v273, %v274
    %v285 = vsel %vm280, %v272, %v273
    %v286 = vsel %vm280, %v271, %v272
    %v287 = vsel %vm280, %v270, %v271
    %v288 = vsel %vm280, %v269, %v270
    %v289 = vsel %vm280, %v268, %v269
    %v290 = vsel %vm280, %v267, %v268
    %v291 = vsel %vm280, %v266, %v267
    %v292 = vsel %vm280, %v265, %v266
    %v293 = vsel %vm280, %v264, %v265
    %v294 = vsel %vm280, %v263, %v264
    %v295 = vsel %vm280, %v262, %v263
    %v296 = vsel %vm280, %v261, %v262
    %v297 = vsel %vm280, %v260, %v261
    %v298 = vsel %vm280, %v259, %v260
    %v299 = vsel %vm280, %v258, %v259
    %v300 = vsel %vm280, %v257, %v258
    %v301 = vsel %vm280, %v256, %v257
    %v302 = vsel %vm280, %v255, %v256
    %v303 = vsel %vm280, %v254, %v255
    %v304 = vsel %vm280, %v277, %v254
    %v305 = vmax.f32 %v230, %v304
    %v306 = vmax.f32 %v231, %v303
    %v307 = vmax.f32 %v232, %v302
    %v308 = vmax.f32 %v233, %v301
    %v309 = vmax.f32 %v234, %v300
    %v310 = vmax.f32 %v235, %v299
    %v311 = vmax.f32 %v236, %v298
    %v312 = vmax.f32 %v237, %v297
    %v313 = vmax.f32 %v238, %v296
    %v314 = vmax.f32 %v239, %v295
    %v315 = vmax.f32 %v240, %v294
    %v316 = vmax.f32 %v241, %v293
    %v317 = vmax.f32 %v242, %v292
    %v318 = vmax.f32 %v243, %v291
    %v319 = vmax.f32 %v244, %v290
    %v320 = vmax.f32 %v245, %v289
    %v321 = vmax.f32 %v246, %v288
    %v322 = vmax.f32 %v247, %v287
    %v323 = vmax.f32 %v248, %v286
    %v324 = vmax.f32 %v249, %v285
    %v325 = vmax.f32 %v250, %v284
    %v326 = vmax.f32 %v251, %v283
    %v327 = vmax.f32 %v252, %v282
    %v328 = vmax.f32 %v253, %v281
    %v329 = vrot.slane %v305, 2
    %v330 = vrot.slane %v306, 2
    %v331 = vrot.slane %v307, 2
    %v332 = vrot.slane %v308, 2
    %v333 = vrot.slane %v309, 2
    %v334 = vrot.slane %v310, 2
    %v335 = vrot.slane %v311, 2
    %v336 = vrot.slane %v312, 2
    %v337 = vrot.slane %v313, 2
    %v338 = vrot.slane %v314, 2
    %v339 = vrot.slane %v315, 2
    %v340 = vrot.slane %v316, 2
    %v341 = vrot.slane %v317, 2
    %v342 = vrot.slane %v318, 2
    %v343 = vrot.slane %v319, 2
    %v344 = vrot.slane %v320, 2
    %v345 = vrot.slane %v321, 2
    %v346 = vrot.slane %v322, 2
    %v347 = vrot.slane %v323, 2
    %v348 = vrot.slane %v324, 2
    %v349 = vrot.slane %v325, 2
    %v350 = vrot.slane %v326, 2
    %v351 = vrot.slane %v327, 2
    %v352 = vrot.slane %v328, 2
    %vm353 = vcmp.lt.s32.totalorder %v279, 6
    %v354 = vsel %vm353, %v351, %v352
    %v355 = vsel %vm353, %v350, %v351
    %v356 = vsel %vm353, %v349, %v350
    %v357 = vsel %vm353, %v348, %v349
    %v358 = vsel %vm353, %v347, %v348
    %v359 = vsel %vm353, %v346, %v347
    %v360 = vsel %vm353, %v345, %v346
    %v361 = vsel %vm353, %v344, %v345
    %v362 = vsel %vm353, %v343, %v344
    %v363 = vsel %vm353, %v342, %v343
    %v364 = vsel %vm353, %v341, %v342
    %v365 = vsel %vm353, %v340, %v341
    %v366 = vsel %vm353, %v339, %v340
    %v367 = vsel %vm353, %v338, %v339
    %v368 = vsel %vm353, %v337, %v338
    %v369 = vsel %vm353, %v336, %v337
    %v370 = vsel %vm353, %v335, %v336
    %v371 = vsel %vm353, %v334, %v335
    %v372 = vsel %vm353, %v333, %v334
    %v373 = vsel %vm353, %v332, %v333
    %v374 = vsel %vm353, %v331, %v332
    %v375 = vsel %vm353, %v330, %v331
    %v376 = vsel %vm353, %v329, %v330
    %v377 = vsel %vm353, %v352, %v329
    %v378 = vmax.f32 %v305, %v376
    %v379 = vmax.f32 %v306, %v375
    %v380 = vmax.f32 %v307, %v374
    %v381 = vmax.f32 %v308, %v373
    %v382 = vmax.f32 %v309, %v372
    %v383 = vmax.f32 %v310, %v371
    %v384 = vmax.f32 %v311, %v370
    %v385 = vmax.f32 %v312, %v369
    %v386 = vmax.f32 %v313, %v368
    %v387 = vmax.f32 %v314, %v367
    %v388 = vmax.f32 %v315, %v366
    %v389 = vmax.f32 %v316, %v365
    %v390 = vmax.f32 %v317, %v364
    %v391 = vmax.f32 %v318, %v363
    %v392 = vmax.f32 %v319, %v362
    %v393 = vmax.f32 %v320, %v361
    %v394 = vmax.f32 %v321, %v360
    %v395 = vmax.f32 %v322, %v359
    %v396 = vmax.f32 %v323, %v358
    %v397 = vmax.f32 %v324, %v357
    %v398 = vmax.f32 %v325, %v356
    %v399 = vmax.f32 %v326, %v355
    %v400 = vmax.f32 %v327, %v354
    %v401 = vmax.f32 %v328, %v377
    %v402 = vrot.slane %v230, 6
    %v403 = vrot.slane %v231, 6
    %v404 = vrot.slane %v232, 6
    %v405 = vrot.slane %v233, 6
    %v406 = vrot.slane %v234, 6
    %v407 = vrot.slane %v235, 6
    %v408 = vrot.slane %v236, 6
    %v409 = vrot.slane %v237, 6
    %v410 = vrot.slane %v238, 6
    %v411 = vrot.slane %v239, 6
    %v412 = vrot.slane %v240, 6
    %v413 = vrot.slane %v241, 6
    %v414 = vrot.slane %v242, 6
    %v415 = vrot.slane %v243, 6
    %v416 = vrot.slane %v244, 6
    %v417 = vrot.slane %v245, 6
    %v418 = vrot.slane %v246, 6
    %v419 = vrot.slane %v247, 6
    %v420 = vrot.slane %v248, 6
    %v421 = vrot.slane %v249, 6
    %v422 = vrot.slane %v250, 6
    %v423 = vrot.slane %v251, 6
    %v424 = vrot.slane %v252, 6
    %v425 = vrot.slane %v253, 6
    %vm426 = vcmp.lt.s32.totalorder %v279, 2
    %v427 = vsel %vm426, %v424, %v425
    %v428 = vsel %vm426, %v423, %v424
    %v429 = vsel %vm426, %v422, %v423
    %v430 = vsel %vm426, %v421, %v422
    %v431 = vsel %vm426, %v420, %v421
    %v432 = vsel %vm426, %v419, %v420
    %v433 = vsel %vm426, %v418, %v419
    %v434 = vsel %vm426, %v417, %v418
    %v435 = vsel %vm426, %v416, %v417
    %v436 = vsel %vm426, %v415, %v416
    %v437 = vsel %vm426, %v414, %v415
    %v438 = vsel %vm426, %v413, %v414
    %v439 = vsel %vm426, %v412, %v413
    %v440 = vsel %vm426, %v411, %v412
    %v441 = vsel %vm426, %v410, %v411
    %v442 = vsel %vm426, %v409, %v410
    %v443 = vsel %vm426, %v408, %v409
    %v444 = vsel %vm426, %v407, %v408
    %v445 = vsel %vm426, %v406, %v407
    %v446 = vsel %vm426, %v405, %v406
    %v447 = vsel %vm426, %v404, %v405
    %v448 = vsel %vm426, %v403, %v404
    %v449 = vsel %vm426, %v402, %v403
    %v450 = vsel %vm426, %v425, %v402
    %v451 = vmax.f32 %v378, %v450
    %v452 = vmax.f32 %v379, %v449
    %v453 = vmax.f32 %v380, %v448
    %v454 = vmax.f32 %v381, %v447
    %v455 = vmax.f32 %v382, %v446
    %v456 = vmax.f32 %v383, %v445
    %v457 = vmax.f32 %v384, %v444
    %v458 = vmax.f32 %v385, %v443
    %v459 = vmax.f32 %v386, %v442
    %v460 = vmax.f32 %v387, %v441
    %v461 = vmax.f32 %v388, %v440
    %v462 = vmax.f32 %v389, %v439
    %v463 = vmax.f32 %v390, %v438
    %v464 = vmax.f32 %v391, %v437
    %v465 = vmax.f32 %v392, %v436
    %v466 = vmax.f32 %v393, %v435
    %v467 = vmax.f32 %v394, %v434
    %v468 = vmax.f32 %v395, %v433
    %v469 = vmax.f32 %v396, %v432
    %v470 = vmax.f32 %v397, %v431
    %v471 = vmax.f32 %v398, %v430
    %v472 = vmax.f32 %v399, %v429
    %v473 = vmax.f32 %v400, %v428
    %v474 = vmax.f32 %v401, %v427
    %v475 = vld [vmem:[%s1] sm:$0xff]
    %v476 = vld [vmem:[%s1 + $0x8] sm:$0xff]
    %v477 = vld [vmem:[%s1 + $0x10] sm:$0xff]
    %v478 = vld [vmem:[%s1 + $0x18] sm:$0xff]
    %v479 = vld [vmem:[%s1 + $0x20] sm:$0xff]
    %v480 = vld [vmem:[%s1 + $0x28] sm:$0xff]
    %v481 = vld [vmem:[%s1 + $0x30] sm:$0xff]
    %v482 = vld [vmem:[%s1 + $0x38] sm:$0xff]
    %v483 = vld [vmem:[%s1 + $0x40] sm:$0xff]
    %v484 = vld [vmem:[%s1 + $0x48] sm:$0xff]
    %v485 = vld [vmem:[%s1 + $0x50] sm:$0xff]
    %v486 = vld [vmem:[%s1 + $0x58] sm:$0xff]
    %v487 = vld [vmem:[%s1 + $0x60] sm:$0xff]
    %v488 = vld [vmem:[%s1 + $0x68] sm:$0xff]
    %v489 = vld [vmem:[%s1 + $0x70] sm:$0xff]
    %v490 = vld [vmem:[%s1 + $0x78] sm:$0xff]
    %v491 = vld [vmem:[%s1 + $0x80] sm:$0xff]
    %v492 = vld [vmem:[%s1 + $0x88] sm:$0xff]
    %v493 = vld [vmem:[%s1 + $0x90] sm:$0xff]
    %v494 = vld [vmem:[%s1 + $0x98] sm:$0xff]
    %v495 = vld [vmem:[%s1 + $0xa0] sm:$0xff]
    %v496 = vld [vmem:[%s1 + $0xa8] sm:$0xff]
    %v497 = vld [vmem:[%s1 + $0xb0] sm:$0xff]
    %v498 = vld [vmem:[%s1 + $0xb8] sm:$0xff]
    %vm499 = vcmp.eq.f32.partialorder %v14, %v451
    %vm500 = vcmp.eq.f32.partialorder %v15, %v452
    %vm501 = vcmp.eq.f32.partialorder %v16, %v453
    %vm502 = vcmp.eq.f32.partialorder %v17, %v454
    %vm503 = vcmp.eq.f32.partialorder %v18, %v455
    %vm504 = vcmp.eq.f32.partialorder %v19, %v456
    %vm505 = vcmp.eq.f32.partialorder %v20, %v457
    %vm506 = vcmp.eq.f32.partialorder %v21, %v458
    %vm507 = vcmp.eq.f32.partialorder %v22, %v459
    %vm508 = vcmp.eq.f32.partialorder %v23, %v460
    %vm509 = vcmp.eq.f32.partialorder %v24, %v461
    %vm510 = vcmp.eq.f32.partialorder %v25, %v462
    %vm511 = vcmp.eq.f32.partialorder %v26, %v463
    %vm512 = vcmp.eq.f32.partialorder %v27, %v464
    %vm513 = vcmp.eq.f32.partialorder %v28, %v465
    %vm514 = vcmp.eq.f32.partialorder %v29, %v466
    %vm515 = vcmp.eq.f32.partialorder %v30, %v467
    %vm516 = vcmp.eq.f32.partialorder %v31, %v468
    %vm517 = vcmp.eq.f32.partialorder %v32, %v469
    %vm518 = vcmp.eq.f32.partialorder %v33, %v470
    %vm519 = vcmp.eq.f32.partialorder %v34, %v471
    %vm520 = vcmp.eq.f32.partialorder %v35, %v472
    %vm521 = vcmp.eq.f32.partialorder %v36, %v473
    %vm522 = vcmp.eq.f32.partialorder %v37, %v474
    %524 = vset.pattern.permute.xlu0 0
    %525 = vperm.xlu0 %524, %v475
    %v526 = vpop.permute.xlu0 %525
    %529 = vset.pattern.permute.xlu0 0
    %530 = vperm.xlu0 %529, %v476
    %v531 = vpop.permute.xlu0 %530
    %534 = vset.pattern.permute.xlu0 0
    %535 = vperm.xlu0 %534, %v477
    %v536 = vpop.permute.xlu0 %535
    %539 = vset.pattern.permute.xlu0 0
    %540 = vperm.xlu0 %539, %v478
    %v541 = vpop.permute.xlu0 %540
    %544 = vset.pattern.permute.xlu0 0
    %545 = vperm.xlu0 %544, %v479
    %v546 = vpop.permute.xlu0 %545
    %549 = vset.pattern.permute.xlu0 0
    %550 = vperm.xlu0 %549, %v480
    %v551 = vpop.permute.xlu0 %550
    %554 = vset.pattern.permute.xlu0 0
    %555 = vperm.xlu0 %554, %v481
    %v556 = vpop.permute.xlu0 %555
    %559 = vset.pattern.permute.xlu0 0
    %560 = vperm.xlu0 %559, %v482
    %v561 = vpop.permute.xlu0 %560
    %564 = vset.pattern.permute.xlu0 0
    %565 = vperm.xlu0 %564, %v483
    %v566 = vpop.permute.xlu0 %565
    %569 = vset.pattern.permute.xlu0 0
    %570 = vperm.xlu0 %569, %v484
    %v571 = vpop.permute.xlu0 %570
    %574 = vset.pattern.permute.xlu0 0
    %575 = vperm.xlu0 %574, %v485
    %v576 = vpop.permute.xlu0 %575
    %579 = vset.pattern.permute.xlu0 0
    %580 = vperm.xlu0 %579, %v486
    %v581 = vpop.permute.xlu0 %580
    %584 = vset.pattern.permute.xlu0 0
    %585 = vperm.xlu0 %584, %v487
    %v586 = vpop.permute.xlu0 %585
    %589 = vset.pattern.permute.xlu0 0
    %590 = vperm.xlu0 %589, %v488
    %v591 = vpop.permute.xlu0 %590
    %594 = vset.pattern.permute.xlu0 0
    %595 = vperm.xlu0 %594, %v489
    %v596 = vpop.permute.xlu0 %595
    %599 = vset.pattern.permute.xlu0 0
    %600 = vperm.xlu0 %599, %v490
    %v601 = vpop.permute.xlu0 %600
    %604 = vset.pattern.permute.xlu0 0
    %605 = vperm.xlu0 %604, %v491
    %v606 = vpop.permute.xlu0 %605
    %609 = vset.pattern.permute.xlu0 0
    %610 = vperm.xlu0 %609, %v492
    %v611 = vpop.permute.xlu0 %610
    %614 = vset.pattern.permute.xlu0 0
    %615 = vperm.xlu0 %614, %v493
    %v616 = vpop.permute.xlu0 %615
    %619 = vset.pattern.permute.xlu0 0
    %620 = vperm.xlu0 %619, %v494
    %v621 = vpop.permute.xlu0 %620
    %624 = vset.pattern.permute.xlu0 0
    %625 = vperm.xlu0 %624, %v495
    %v626 = vpop.permute.xlu0 %625
    %629 = vset.pattern.permute.xlu0 0
    %630 = vperm.xlu0 %629, %v496
    %v631 = vpop.permute.xlu0 %630
    %634 = vset.pattern.permute.xlu0 0
    %635 = vperm.xlu0 %634, %v497
    %v636 = vpop.permute.xlu0 %635
    %639 = vset.pattern.permute.xlu0 0
    %640 = vperm.xlu0 %639, %v498
    %v641 = vpop.permute.xlu0 %640
    %v643 = vadd.f32 %v14, %v526
    %v644 = vadd.f32 %v15, %v531
    %v645 = vadd.f32 %v16, %v536
    %v646 = vadd.f32 %v17, %v541
    %v647 = vadd.f32 %v18, %v546
    %v648 = vadd.f32 %v19, %v551
    %v649 = vadd.f32 %v20, %v556
    %v650 = vadd.f32 %v21, %v561
    %v651 = vadd.f32 %v22, %v566
    %v652 = vadd.f32 %v23, %v571
    %v653 = vadd.f32 %v24, %v576
    %v654 = vadd.f32 %v25, %v581
    %v655 = vadd.f32 %v26, %v586
    %v656 = vadd.f32 %v27, %v591
    %v657 = vadd.f32 %v28, %v596
    %v658 = vadd.f32 %v29, %v601
    %v659 = vadd.f32 %v30, %v606
    %v660 = vadd.f32 %v31, %v611
    %v661 = vadd.f32 %v32, %v616
    %v662 = vadd.f32 %v33, %v621
    %v663 = vadd.f32 %v34, %v626
    %v664 = vadd.f32 %v35, %v631
    %v665 = vadd.f32 %v36, %v636
    %v666 = vadd.f32 %v37, %v641
    %vm667 = vcmp.gt.f32.partialorder %v643, 0.0
    %vm668 = vcmp.gt.f32.partialorder %v644, 0.0
    %vm669 = vcmp.gt.f32.partialorder %v645, 0.0
    %vm670 = vcmp.gt.f32.partialorder %v646, 0.0
    %vm671 = vcmp.gt.f32.partialorder %v647, 0.0
    %vm672 = vcmp.gt.f32.partialorder %v648, 0.0
    %vm673 = vcmp.gt.f32.partialorder %v649, 0.0
    %vm674 = vcmp.gt.f32.partialorder %v650, 0.0
    %vm675 = vcmp.gt.f32.partialorder %v651, 0.0
    %vm676 = vcmp.gt.f32.partialorder %v652, 0.0
    %vm677 = vcmp.gt.f32.partialorder %v653, 0.0
    %vm678 = vcmp.gt.f32.partialorder %v654, 0.0
    %vm679 = vcmp.gt.f32.partialorder %v655, 0.0
    %vm680 = vcmp.gt.f32.partialorder %v656, 0.0
    %vm681 = vcmp.gt.f32.partialorder %v657, 0.0
    %vm682 = vcmp.gt.f32.partialorder %v658, 0.0
    %vm683 = vcmp.gt.f32.partialorder %v659, 0.0
    %vm684 = vcmp.gt.f32.partialorder %v660, 0.0
    %vm685 = vcmp.gt.f32.partialorder %v661, 0.0
    %vm686 = vcmp.gt.f32.partialorder %v662, 0.0
    %vm687 = vcmp.gt.f32.partialorder %v663, 0.0
    %vm688 = vcmp.gt.f32.partialorder %v664, 0.0
    %vm689 = vcmp.gt.f32.partialorder %v665, 0.0
    %vm690 = vcmp.gt.f32.partialorder %v666, 0.0
    %vm691 = vmand %vm499, %vm667
    %vm692 = vmand %vm500, %vm668
    %vm693 = vmand %vm501, %vm669
    %vm694 = vmand %vm502, %vm670
    %vm695 = vmand %vm503, %vm671
    %vm696 = vmand %vm504, %vm672
    %vm697 = vmand %vm505, %vm673
    %vm698 = vmand %vm506, %vm674
    %vm699 = vmand %vm507, %vm675
    %vm700 = vmand %vm508, %vm676
    %vm701 = vmand %vm509, %vm677
    %vm702 = vmand %vm510, %vm678
    %vm703 = vmand %vm511, %vm679
    %vm704 = vmand %vm512, %vm680
    %vm705 = vmand %vm513, %vm681
    %vm706 = vmand %vm514, %vm682
    %vm707 = vmand %vm515, %vm683
    %vm708 = vmand %vm516, %vm684
    %vm709 = vmand %vm517, %vm685
    %vm710 = vmand %vm518, %vm686
    %vm711 = vmand %vm519, %vm687
    %vm712 = vmand %vm520, %vm688
    %vm713 = vmand %vm521, %vm689
    %vm714 = vmand %vm522, %vm690
    %vm715 = vmpackc.low %vm692, %vm691
    %vm716 = vmpackc.low %vm694, %vm693
    %vm717 = vmpackc.even %vm716, %vm715
    %vm718 = vmpackc.low %vm696, %vm695
    %vm719 = vmpackc.low %vm698, %vm697
    %vm720 = vmpackc.even %vm719, %vm718
    %vm721 = vmpackc.low %vm700, %vm699
    %vm722 = vmpackc.low %vm702, %vm701
    %vm723 = vmpackc.even %vm722, %vm721
    %vm724 = vmpackc.low %vm704, %vm703
    %vm725 = vmpackc.low %vm706, %vm705
    %vm726 = vmpackc.even %vm725, %vm724
    %vm727 = vmpackc.low %vm708, %vm707
    %vm728 = vmpackc.low %vm710, %vm709
    %vm729 = vmpackc.even %vm728, %vm727
    %vm730 = vmpackc.low %vm712, %vm711
    %vm731 = vmpackc.low %vm714, %vm713
    %vm732 = vmpackc.even %vm731, %vm730
    %v733 = vsel %vm717, 16843009, 0
    %v734 = vsel %vm720, 16843009, 0
    %v735 = vsel %vm723, 16843009, 0
    %v736 = vsel %vm726, 16843009, 0
    %v737 = vsel %vm729, 16843009, 0
    %v738 = vsel %vm732, 16843009, 0
    %739 = vst [vmem:[#allocation2] sm:$0xff] %v733
    %740 = vst [vmem:[#allocation2 + $0x8] sm:$0xff] %v734
    %741 = vst [vmem:[#allocation2 + $0x10] sm:$0xff] %v735
    %742 = vst [vmem:[#allocation2 + $0x18] sm:$0xff] %v736
    %743 = vst [vmem:[#allocation2 + $0x20] sm:$0xff] %v737
    %744 = vst [vmem:[#allocation2 + $0x28] sm:$0xff] %v738
    // Predicated region
    $region10: #{nms_framed_mask.1} parent=1 // pred_check
      _
    $region11: #{nms_framed_mask.1} parent=1 // pred_check_branch
      %746 = sbr.rel (0) target = $region13
    $region12: #{nms_framed_mask.1} parent=1 // pred_region
      %s748 = ssub.s32 768, 768
      %749 = vsyncadd [#allocation3], %s748
      %s750 = sshll.u32 [#allocation2], 4
      %s751 = int_to_ptr.vmem [resolvable:$true] %s750
      %756 = dma.vmem_to_hbm [thread:$0]  %s751, 768, %s2, [#allocation3], 128, 128, 8
    $region13: #{nms_framed_mask.1} parent=1 // pred_fallthru
      _
    // Predicated region
    $region14: #{nms_framed_mask.1} parent=1 // pred_check
      _
    $region15: #{nms_framed_mask.1} parent=1 // pred_check_branch
      %758 = sbr.rel (0) target = $region17
    $region16: #{nms_framed_mask.1} parent=1 // pred_region
      %759 = dma.done [#allocation3], 768
    $region17: #{nms_framed_mask.1} parent=1 // pred_fallthru
      _
    %760 = vsyncpa [#allocation3], 1

</llo_original>
